<compile_context>
chip_gen: v7x
topology: tpu7x:2x2x1
jax: 0.10.0
libtpu: 0.0.40
codegen_flags: <defaults>
</compile_context>

<pallas_src>
import math

import jax
import jax.numpy as jnp
from jax.experimental import pallas as pl
from jax.experimental.pallas import tpu as pltpu

ATT_TYPE = "RoPE"   # implemented branch of Attention.forward


# --------------------------------------------------------------------------- #
# Kernel 1: fused QKV projection + RoPE (lane-dense, global half-split layout) #
# --------------------------------------------------------------------------- #
def make_qkv_rope_kernel(d_half):
    def kernel(x_ref, cos_ref, sin_ref, wq_ref, wk_ref, wv_ref,
               q_ref, k_ref, v_ref):
        x = x_ref[0].astype(jnp.bfloat16)                 # (TS, D)  MXU input
        cos = cos_ref[...]                                # (TS, D/2) f32
        sin = sin_ref[...]                                # (TS, D/2) f32

        # bf16 MXU matmuls with f32 accumulation (1/sqrt(Dh) already folded
        # into wq at prepare time).
        q = jnp.dot(x, wq_ref[...], preferred_element_type=jnp.float32)
        k = jnp.dot(x, wk_ref[...], preferred_element_type=jnp.float32)
        v = jnp.dot(x, wv_ref[...], preferred_element_type=jnp.float32)

        # RoPE: columns are laid out [even rotary dims of all heads | odd dims]
        # (global half-split), so the rotation is two full-width f32 multiplies
        # plus one concat -- no per-head slicing / relayouts.
        qa, qb = q[:, :d_half], q[:, d_half:]
        ka, kb = k[:, :d_half], k[:, d_half:]
        q_ref[0] = jnp.concatenate(
            [qa * cos - qb * sin, qb * cos + qa * sin], axis=-1).astype(q_ref.dtype)
        k_ref[0] = jnp.concatenate(
            [ka * cos - kb * sin, kb * cos + ka * sin], axis=-1).astype(k_ref.dtype)
        v_ref[0] = v.astype(v_ref.dtype)
    return kernel


# --------------------------------------------------------------------------- #
# Kernel 2: flash attention, heads batched, online softmax over KV tiles       #
# --------------------------------------------------------------------------- #
def make_flash_kernel(tq, tk, causal):
    def kernel(q_ref, k_ref, v_ref, mask_ref, o_ref, m_scr, l_scr, acc_scr):
        qi = pl.program_id(1)
        ki = pl.program_id(2)

        @pl.when(ki == 0)
        def _():
            m_scr[...] = jnp.full(m_scr.shape, -1e30, jnp.float32)
            l_scr[...] = jnp.zeros(l_scr.shape, jnp.float32)
            acc_scr[...] = jnp.zeros(acc_scr.shape, jnp.float32)

        def update():
            q = q_ref[0]                                   # (H, TQ, Dh) bf16
            k = k_ref[0]                                   # (H, TK, Dh) bf16
            v = v_ref[0]                                   # (H, TK, Dh) bf16
            # All heads in one batched MXU pass; scale folded into wq.
            s = jnp.einsum('hqd,hkd->hqk', q, k,
                           preferred_element_type=jnp.float32)
            s = s + mask_ref[...][None, :, :]              # additive mask (f32)
            m_prev = m_scr[...]
            m_new = jnp.maximum(m_prev, jnp.max(s, axis=-1, keepdims=True))
            alpha = jnp.exp(m_prev - m_new)
            p = jnp.exp(s - m_new)
            l_scr[...] = alpha * l_scr[...] + jnp.sum(p, axis=-1, keepdims=True)
            acc_scr[...] = alpha * acc_scr[...] + jnp.einsum(
                'hqk,hkd->hqd', p.astype(v.dtype), v,
                preferred_element_type=jnp.float32)
            m_scr[...] = m_new

        if causal:
            # Skip KV tiles that lie entirely above the diagonal (fully masked).
            pl.when(ki * tk <= qi * tq + (tq - 1))(update)
        else:
            update()

        @pl.when(ki == pl.num_programs(2) - 1)
        def _():
            inv_l = pl.reciprocal(l_scr[...], approx=True)   # EUP slot, ~free
            o_ref[0] = (acc_scr[...] * inv_l).astype(o_ref.dtype)
    return kernel


# --------------------------------------------------------------------------- #
# Kernel 3: output projection (wo), full-D contraction on the MXU             #
# --------------------------------------------------------------------------- #
def out_proj_kernel(x_ref, w_ref, o_ref):
    o_ref[0] = jnp.dot(x_ref[0], w_ref[...],
                       preferred_element_type=jnp.float32).astype(o_ref.dtype)


# --------------------------------------------------------------------------- #
# One-time parameter / table preparation (hoisted out of the per-call path)   #
# --------------------------------------------------------------------------- #
def prepare_attention_params(params, n_heads, dtype=jnp.bfloat16):
    """Permute wq/wk columns to the global half-split RoPE layout, fold
    1/sqrt(head_dim) into wq, and cast all weights to bf16 for the MXU."""
    D = params["wq"].shape[0]
    Dh = D // n_heads
    idx = jnp.arange(D, dtype=jnp.int32).reshape(n_heads, Dh // 2, 2)
    perm = jnp.concatenate([idx[..., 0].reshape(-1), idx[..., 1].reshape(-1)])
    scale = 1.0 / math.sqrt(Dh)
    return dict(
        wq=(params["wq"][:, perm] * scale).astype(dtype),
        wk=params["wk"][:, perm].astype(dtype),
        wv=params["wv"].astype(dtype),
        wo=params["wo"].astype(dtype),
    )


def prepare_rope_tables(cos, sin, n_heads):
    """(S, Dh/2) cos/sin -> lane-dense (S, D/2) tables matching the layout."""
    return jnp.tile(cos, (1, n_heads)), jnp.tile(sin, (1, n_heads))


def _pick_tile(n, cap):
    t = min(n, cap)
    while n % t:
        t -= 1
    return t


def _vmem_limit(block_bytes, scratch_bytes=0):
    # double-buffered blocks + scratch + headroom, capped at v7x physical VMEM
    need = 2 * block_bytes + scratch_bytes + (2 << 20)
    return int(min(max(need, 8 << 20), 64 << 20))


# --------------------------------------------------------------------------- #
# Wrapper: Attention.forward (RoPE branch)                                     #
# --------------------------------------------------------------------------- #
def attention_pallas(x, w, cos_t, sin_t, mask, *, n_heads, causal=True,
                     seq_tile=None, q_tile=None, kv_tile=None):
    """x: (B, S, D) f32.  w: prepared weights (bf16, permuted, scale-folded).
    cos_t/sin_t: (S, D/2) tables from prepare_rope_tables.
    mask: (S, S) additive f32 mask; causal=True enables masked-tile skipping."""
    B, S, D = x.shape
    H = n_heads
    Dh = D // H
    D2 = D // 2
    bf16 = jnp.bfloat16

    TS = seq_tile or _pick_tile(S, 256)
    TQ = q_tile or _pick_tile(S, 128)
    TK = kv_tile or _pick_tile(S, 128)
    NS, NQ, NK = S // TS, S // TQ, S // TK

    # ---------------- kernel 1: QKV projection + RoPE ----------------
    blk1 = TS * D * 4 + 2 * TS * D2 * 4 + 3 * D * D * 2 + 3 * TS * D * 2
    qkv_call = pl.pallas_call(
        make_qkv_rope_kernel(D2),
        out_shape=(jax.ShapeDtypeStruct((B, S, D), bf16),
                   jax.ShapeDtypeStruct((B, S, D), bf16),
                   jax.ShapeDtypeStruct((B, S, D), bf16)),
        grid=(B, NS),
        in_specs=[
            pl.BlockSpec((1, TS, D), lambda b, si: (b, si, 0)),   # x
            pl.BlockSpec((TS, D2), lambda b, si: (si, 0)),        # cos table
            pl.BlockSpec((TS, D2), lambda b, si: (si, 0)),        # sin table
            pl.BlockSpec((D, D), lambda b, si: (0, 0)),           # wq (scaled)
            pl.BlockSpec((D, D), lambda b, si: (0, 0)),           # wk
            pl.BlockSpec((D, D), lambda b, si: (0, 0)),           # wv
        ],
        out_specs=(pl.BlockSpec((1, TS, D), lambda b, si: (b, si, 0)),
                   pl.BlockSpec((1, TS, D), lambda b, si: (b, si, 0)),
                   pl.BlockSpec((1, TS, D), lambda b, si: (b, si, 0))),
        compiler_params=pltpu.CompilerParams(
            dimension_semantics=("parallel", "parallel"),
            vmem_limit_bytes=_vmem_limit(blk1)),
        cost_estimate=pl.CostEstimate(
            flops=2 * 3 * B * S * D * D,
            transcendentals=0,
            bytes_accessed=B * S * D * 4 + 3 * D * D * 2 + 3 * B * S * D * 2),
    )
    q_rot, k_rot, v_p = qkv_call(x, cos_t, sin_t, w["wq"], w["wk"], w["wv"])

    # Head-major regroup (XLA-side layout plumbing). q/k keep a half-split
    # within-head feature order consistently, which leaves q.k^T unchanged.
    q4 = q_rot.reshape(B, S, 2, H, Dh // 2).transpose(0, 3, 1, 2, 4).reshape(B, H, S, Dh)
    k4 = k_rot.reshape(B, S, 2, H, Dh // 2).transpose(0, 3, 1, 2, 4).reshape(B, H, S, Dh)
    v4 = v_p.reshape(B, S, H, Dh).transpose(0, 2, 1, 3)

    # ---------------- kernel 2: flash attention (online softmax) ----------------
    blk2 = H * TQ * Dh * 2 + 2 * H * TK * Dh * 2 + TQ * TK * 4 + H * TQ * Dh * 2
    scratch2 = 2 * H * TQ * 4 + H * TQ * Dh * 4 + H * TQ * TK * 4
    flash_call = pl.pallas_call(
        make_flash_kernel(TQ, TK, causal),
        out_shape=jax.ShapeDtypeStruct((B, H, S, Dh), bf16),
        grid=(B, NQ, NK),
        in_specs=[
            pl.BlockSpec((1, H, TQ, Dh), lambda b, qi, ki: (b, 0, qi, 0)),  # q
            pl.BlockSpec((1, H, TK, Dh), lambda b, qi, ki: (b, 0, ki, 0)),  # k
            pl.BlockSpec((1, H, TK, Dh), lambda b, qi, ki: (b, 0, ki, 0)),  # v
            pl.BlockSpec((TQ, TK), lambda b, qi, ki: (qi, ki)),             # mask
        ],
        out_specs=pl.BlockSpec((1, H, TQ, Dh), lambda b, qi, ki: (b, 0, qi, 0)),
        scratch_shapes=[pltpu.VMEM((H, TQ, 1), jnp.float32),   # running max
                        pltpu.VMEM((H, TQ, 1), jnp.float32),   # running sum
                        pltpu.VMEM((H, TQ, Dh), jnp.float32)], # accumulator
        compiler_params=pltpu.CompilerParams(
            dimension_semantics=("parallel", "parallel", "arbitrary"),
            vmem_limit_bytes=_vmem_limit(blk2, scratch2)),
        cost_estimate=pl.CostEstimate(
            flops=4 * B * H * S * S * Dh,
            transcendentals=B * H * S * S,
            bytes_accessed=4 * B * S * D * 2 + S * S * 4),
    )
    ctx4 = flash_call(q4, k4, v4, mask)

    # Concatenate heads back into a lane-dense (B, S, D) slab.
    ctx = ctx4.transpose(0, 2, 1, 3).reshape(B, S, D)

    # ---------------- kernel 3: output projection (wo) ----------------
    blk3 = TS * D * 2 + D * D * 2 + TS * D * 4
    proj_call = pl.pallas_call(
        out_proj_kernel,
        out_shape=jax.ShapeDtypeStruct((B, S, D), x.dtype),
        grid=(B, NS),
        in_specs=[
            pl.BlockSpec((1, TS, D), lambda b, si: (b, si, 0)),   # context
            pl.BlockSpec((D, D), lambda b, si: (0, 0)),           # wo
        ],
        out_specs=pl.BlockSpec((1, TS, D), lambda b, si: (b, si, 0)),
        compiler_params=pltpu.CompilerParams(
            dimension_semantics=("parallel", "parallel"),
            vmem_limit_bytes=_vmem_limit(blk3)),
        cost_estimate=pl.CostEstimate(
            flops=2 * B * S * D * D,
            transcendentals=0,
            bytes_accessed=B * S * D * 2 + D * D * 2 + B * S * D * 4),
    )
    return proj_call(ctx, w["wo"])


# ---------------- pure-JAX reference (mirrors the PyTorch forward) ----------------
def attention_ref(x, params, cos, sin, mask, *, n_heads):
    B, S, D = x.shape
    Dh = D // n_heads
    q = (x @ params["wq"]).reshape(B, S, n_heads, Dh)
    k = (x @ params["wk"]).reshape(B, S, n_heads, Dh)
    v = (x @ params["wv"]).reshape(B, S, n_heads, Dh)

    def rope(t):  # interleaved (complex) rotation, as in apply_rotary_emb
        te, to = t[..., 0::2], t[..., 1::2]
        c = cos[None, :, None, :]
        s = sin[None, :, None, :]
        return jnp.stack([te * c - to * s, te * s + to * c], -1).reshape(B, S, n_heads, Dh)

    q, k = rope(q), rope(k)
    q, k, v = (a.transpose(0, 2, 1, 3) for a in (q, k, v))       # (B, H, S, Dh)
    scores = jnp.einsum("bhqd,bhkd->bhqk", q, k) / math.sqrt(Dh) + mask[None, None]
    p = jax.nn.softmax(scores, axis=-1)
    out = jnp.einsum("bhqk,bhkd->bhqd", p, v).transpose(0, 2, 1, 3).reshape(B, S, D)
    return out @ params["wo"]


if __name__ == "__main__":
    B, S, D, H = 2, 8, 32, 4
    Dh = D // H

    key = jax.random.PRNGKey(0)
    ks = jax.random.split(key, 5)
    init = lambda k, shp: jax.random.normal(k, shp, jnp.float32) / math.sqrt(shp[0])
    params = dict(
        wq=init(ks[0], (D, D)), wk=init(ks[1], (D, D)),
        wv=init(ks[2], (D, D)), wo=init(ks[3], (D, D)),
    )
    x = jax.random.normal(ks[4], (B, S, D), jnp.float32)

    # RoPE tables (theta = 10000) and additive causal mask.
    inv_freq = 1.0 / (10000.0 ** (jnp.arange(0, Dh, 2, dtype=jnp.float32) / Dh))
    angles = jnp.arange(S, dtype=jnp.float32)[:, None] * inv_freq[None, :]   # (S, Dh/2)
    cos, sin = jnp.cos(angles), jnp.sin(angles)
    mask = jnp.where(jnp.arange(S)[None, :] > jnp.arange(S)[:, None],
                     -1e9, 0.0).astype(jnp.float32)

    # One-time prep: permute + scale-fold + bf16 cast; lane-dense RoPE tables.
    w = prepare_attention_params(params, H)
    cos_t, sin_t = prepare_rope_tables(cos, sin, H)

    out = attention_pallas(x, w, cos_t, sin_t, mask, n_heads=H, causal=True)
    out = jax.block_until_ready(out)

    ref = attention_ref(x, params, cos, sin, mask, n_heads=H)
    assert out.shape == (B, S, D)
    assert bool(jnp.all(jnp.isfinite(out)))
    max_err = float(jnp.max(jnp.abs(out - ref)))
    # bf16 MXU path vs. f32 reference -> loose-ish but meaningful tolerance.
    assert bool(jnp.allclose(out, ref, atol=5e-2, rtol=5e-2)), f"mismatch: {max_err}"
    print("KERNEL_OK")
</pallas_src>

<mosaic_0001>
module attributes {stable_mosaic.version = 11 : i64} {
  func.func @kernel(%arg0: i32, %arg1: i32, %arg2: memref<1x8x32xf32, #tpu.memory_space<vmem>>, %arg3: memref<8x16xf32, #tpu.memory_space<vmem>>, %arg4: memref<8x16xf32, #tpu.memory_space<vmem>>, %arg5: memref<32x32xbf16, #tpu.memory_space<vmem>>, %arg6: memref<32x32xbf16, #tpu.memory_space<vmem>>, %arg7: memref<32x32xbf16, #tpu.memory_space<vmem>>, %arg8: memref<1x8x32xbf16, #tpu.memory_space<vmem>>, %arg9: memref<1x8x32xbf16, #tpu.memory_space<vmem>>, %arg10: memref<1x8x32xbf16, #tpu.memory_space<vmem>>) attributes {dimension_semantics = [#tpu.dimension_semantics<parallel>, #tpu.dimension_semantics<parallel>], iteration_bounds = array<i64: 2, 1>, scalar_prefetch = 0 : i64, scratch_operands = 0 : i64, tpu.core_type = #tpu.core_type<tc>, window_params = [{transform_indices = @transform_0, window_bounds = array<i64: 1, 8, 32>}, {transform_indices = @transform_1, window_bounds = array<i64: 8, 16>}, {transform_indices = @transform_2, window_bounds = array<i64: 8, 16>}, {pipeline_mode = #tpu.pipeline_mode<synchronous>, transform_indices = @transform_3, window_bounds = array<i64: 32, 32>}, {pipeline_mode = #tpu.pipeline_mode<synchronous>, transform_indices = @transform_4, window_bounds = array<i64: 32, 32>}, {pipeline_mode = #tpu.pipeline_mode<synchronous>, transform_indices = @transform_5, window_bounds = array<i64: 32, 32>}, {transform_indices = @transform_6, window_bounds = array<i64: 1, 8, 32>}, {transform_indices = @transform_7, window_bounds = array<i64: 1, 8, 32>}, {transform_indices = @transform_8, window_bounds = array<i64: 1, 8, 32>}]} {
    %c0 = arith.constant 0 : index
    %c0_0 = arith.constant 0 : index
    %c0_1 = arith.constant 0 : index
    %0 = vector.load %arg2[%c0, %c0_0, %c0_1] : memref<1x8x32xf32, #tpu.memory_space<vmem>>, vector<1x8x32xf32>
    %1 = vector.shape_cast %0 : vector<1x8x32xf32> to vector<8x32xf32>
    %2 = arith.truncf %1 : vector<8x32xf32> to vector<8x32xbf16>
    %c0_2 = arith.constant 0 : index
    %c0_3 = arith.constant 0 : index
    %3 = vector.load %arg3[%c0_2, %c0_3] : memref<8x16xf32, #tpu.memory_space<vmem>>, vector<8x16xf32>
    %c0_4 = arith.constant 0 : index
    %c0_5 = arith.constant 0 : index
    %4 = vector.load %arg4[%c0_4, %c0_5] : memref<8x16xf32, #tpu.memory_space<vmem>>, vector<8x16xf32>
    %c0_6 = arith.constant 0 : index
    %c0_7 = arith.constant 0 : index
    %5 = vector.load %arg5[%c0_6, %c0_7] : memref<32x32xbf16, #tpu.memory_space<vmem>>, vector<32x32xbf16>
    %cst = arith.constant dense<0.000000e+00> : vector<8x32xf32>
    %6 = tpu.matmul %2, %5, %cst {dimension_numbers = #tpu.dot_dimension_numbers<[1], [0], [0], [1], [0, 0, 1, 1], [], []>} : vector<8x32xbf16>, vector<32x32xbf16>, vector<8x32xf32> -> vector<8x32xf32>
    %c0_8 = arith.constant 0 : index
    %c0_9 = arith.constant 0 : index
    %7 = vector.load %arg6[%c0_8, %c0_9] : memref<32x32xbf16, #tpu.memory_space<vmem>>, vector<32x32xbf16>
    %cst_10 = arith.constant dense<0.000000e+00> : vector<8x32xf32>
    %8 = tpu.matmul %2, %7, %cst_10 {dimension_numbers = #tpu.dot_dimension_numbers<[1], [0], [0], [1], [0, 0, 1, 1], [], []>} : vector<8x32xbf16>, vector<32x32xbf16>, vector<8x32xf32> -> vector<8x32xf32>
    %c0_11 = arith.constant 0 : index
    %c0_12 = arith.constant 0 : index
    %9 = vector.load %arg7[%c0_11, %c0_12] : memref<32x32xbf16, #tpu.memory_space<vmem>>, vector<32x32xbf16>
    %cst_13 = arith.constant dense<0.000000e+00> : vector<8x32xf32>
    %10 = tpu.matmul %2, %9, %cst_13 {dimension_numbers = #tpu.dot_dimension_numbers<[1], [0], [0], [1], [0, 0, 1, 1], [], []>} : vector<8x32xbf16>, vector<32x32xbf16>, vector<8x32xf32> -> vector<8x32xf32>
    %11 = vector.extract_strided_slice %6 {offsets = [0, 0], sizes = [8, 16], strides = [1, 1]} : vector<8x32xf32> to vector<8x16xf32>
    %12 = vector.extract_strided_slice %6 {offsets = [0, 16], sizes = [8, 16], strides = [1, 1]} : vector<8x32xf32> to vector<8x16xf32>
    %13 = vector.extract_strided_slice %8 {offsets = [0, 0], sizes = [8, 16], strides = [1, 1]} : vector<8x32xf32> to vector<8x16xf32>
    %14 = vector.extract_strided_slice %8 {offsets = [0, 16], sizes = [8, 16], strides = [1, 1]} : vector<8x32xf32> to vector<8x16xf32>
    %15 = arith.mulf %11, %3 : vector<8x16xf32>
    %16 = arith.mulf %12, %4 : vector<8x16xf32>
    %17 = arith.subf %15, %16 : vector<8x16xf32>
    %18 = arith.mulf %12, %3 : vector<8x16xf32>
    %19 = arith.mulf %11, %4 : vector<8x16xf32>
    %20 = arith.addf %18, %19 : vector<8x16xf32>
    %21 = tpu.concatenate %17, %20 in 1 : vector<8x16xf32>, vector<8x16xf32> -> vector<8x32xf32>
    %22 = arith.truncf %21 : vector<8x32xf32> to vector<8x32xbf16>
    %c0_14 = arith.constant 0 : index
    %c0_15 = arith.constant 0 : index
    %c0_16 = arith.constant 0 : index
    %23 = vector.load %arg8[%c0_14, %c0_15, %c0_16] : memref<1x8x32xbf16, #tpu.memory_space<vmem>>, vector<1x8x32xbf16>
    %24 = vector.shape_cast %23 : vector<1x8x32xbf16> to vector<8x32xbf16>
    %25 = vector.shape_cast %22 : vector<8x32xbf16> to vector<1x8x32xbf16>
    tpu.vector_store %arg8[%c0_14, %c0_15, %c0_16], %25 {strides = array<i32>} : memref<1x8x32xbf16, #tpu.memory_space<vmem>>, vector<1x8x32xbf16>,
    %26 = arith.mulf %13, %3 : vector<8x16xf32>
    %27 = arith.mulf %14, %4 : vector<8x16xf32>
    %28 = arith.subf %26, %27 : vector<8x16xf32>
    %29 = arith.mulf %14, %3 : vector<8x16xf32>
    %30 = arith.mulf %13, %4 : vector<8x16xf32>
    %31 = arith.addf %29, %30 : vector<8x16xf32>
    %32 = tpu.concatenate %28, %31 in 1 : vector<8x16xf32>, vector<8x16xf32> -> vector<8x32xf32>
    %33 = arith.truncf %32 : vector<8x32xf32> to vector<8x32xbf16>
    %c0_17 = arith.constant 0 : index
    %c0_18 = arith.constant 0 : index
    %c0_19 = arith.constant 0 : index
    %34 = vector.load %arg9[%c0_17, %c0_18, %c0_19] : memref<1x8x32xbf16, #tpu.memory_space<vmem>>, vector<1x8x32xbf16>
    %35 = vector.shape_cast %34 : vector<1x8x32xbf16> to vector<8x32xbf16>
    %36 = vector.shape_cast %33 : vector<8x32xbf16> to vector<1x8x32xbf16>
    tpu.vector_store %arg9[%c0_17, %c0_18, %c0_19], %36 {strides = array<i32>} : memref<1x8x32xbf16, #tpu.memory_space<vmem>>, vector<1x8x32xbf16>,
    %37 = arith.truncf %10 : vector<8x32xf32> to vector<8x32xbf16>
    %c0_20 = arith.constant 0 : index
    %c0_21 = arith.constant 0 : index
    %c0_22 = arith.constant 0 : index
    %38 = vector.load %arg10[%c0_20, %c0_21, %c0_22] : memref<1x8x32xbf16, #tpu.memory_space<vmem>>, vector<1x8x32xbf16>
    %39 = vector.shape_cast %38 : vector<1x8x32xbf16> to vector<8x32xbf16>
    %40 = vector.shape_cast %37 : vector<8x32xbf16> to vector<1x8x32xbf16>
    tpu.vector_store %arg10[%c0_20, %c0_21, %c0_22], %40 {strides = array<i32>} : memref<1x8x32xbf16, #tpu.memory_space<vmem>>, vector<1x8x32xbf16>,
    return
  }
  func.func @transform_0(%arg0: i32, %arg1: i32) -> (i32, i32, i32) {
    %c0_i32 = arith.constant 0 : i32
    %c0_i32_0 = arith.constant 0 : i32
    return %arg0, %arg1, %c0_i32 : i32, i32, i32
  }
  func.func @transform_1(%arg0: i32, %arg1: i32) -> (i32, i32) {
    %c0_i32 = arith.constant 0 : i32
    %c0_i32_0 = arith.constant 0 : i32
    return %arg1, %c0_i32 : i32, i32
  }
  func.func @transform_2(%arg0: i32, %arg1: i32) -> (i32, i32) {
    %c0_i32 = arith.constant 0 : i32
    %c0_i32_0 = arith.constant 0 : i32
    return %arg1, %c0_i32 : i32, i32
  }
  func.func @transform_3(%arg0: i32, %arg1: i32) -> (i32, i32) {
    %c0_i32 = arith.constant 0 : i32
    %c0_i32_0 = arith.constant 0 : i32
    %c0_i32_1 = arith.constant 0 : i32
    return %c0_i32, %c0_i32_0 : i32, i32
  }
  func.func @transform_4(%arg0: i32, %arg1: i32) -> (i32, i32) {
    %c0_i32 = arith.constant 0 : i32
    %c0_i32_0 = arith.constant 0 : i32
    %c0_i32_1 = arith.constant 0 : i32
    return %c0_i32, %c0_i32_0 : i32, i32
  }
  func.func @transform_5(%arg0: i32, %arg1: i32) -> (i32, i32) {
    %c0_i32 = arith.constant 0 : i32
    %c0_i32_0 = arith.constant 0 : i32
    %c0_i32_1 = arith.constant 0 : i32
    return %c0_i32, %c0_i32_0 : i32, i32
  }
  func.func @transform_6(%arg0: i32, %arg1: i32) -> (i32, i32, i32) {
    %c0_i32 = arith.constant 0 : i32
    %c0_i32_0 = arith.constant 0 : i32
    return %arg0, %arg1, %c0_i32 : i32, i32, i32
  }
  func.func @transform_7(%arg0: i32, %arg1: i32) -> (i32, i32, i32) {
    %c0_i32 = arith.constant 0 : i32
    %c0_i32_0 = arith.constant 0 : i32
    return %arg0, %arg1, %c0_i32 : i32, i32, i32
  }
  func.func @transform_8(%arg0: i32, %arg1: i32) -> (i32, i32, i32) {
    %c0_i32 = arith.constant 0 : i32
    %c0_i32_0 = arith.constant 0 : i32
    return %arg0, %arg1, %c0_i32 : i32, i32, i32
  }
}

</mosaic_0001>

<llo_original>
// kernel: tpu_custom_call.1
$region0: #{tpu_custom_call.1}
  #allocation0 [shape = 'u32[]', space=smem, size = 0x4, offset = 0x4, fixed_abs, tag = 'smem constant byte address 0x4 - core index']
  #allocation1 [shape = 'u32[144,128]{1,0:T(1,128)}', space=vmem, size = 0x12000, scoped, tag = 'internal scratch']
  %s0 = inlined_call_operand.hbm [shape: f32[2,8,32], index: 0, kind: input, shape index: {}]
  %s1 = inlined_call_operand.hbm [shape: f32[8,16], index: 1, kind: input, shape index: {}]
  %s2 = inlined_call_operand.hbm [shape: f32[8,16], index: 2, kind: input, shape index: {}]
  %s3 = inlined_call_operand.hbm [shape: bf16[32,32], index: 3, kind: input, shape index: {}]
  %s4 = inlined_call_operand.hbm [shape: bf16[32,32], index: 4, kind: input, shape index: {}]
  %s5 = inlined_call_operand.vmem [shape: bf16[32,32], index: 5, kind: input, shape index: {}]
  %s6 = inlined_call_operand.hbm [shape: bf16[2,8,32], index: 6, kind: output, shape index: {0}]
  %s7 = inlined_call_operand.hbm [shape: bf16[2,8,32], index: 7, kind: output, shape index: {1}]
  %s8 = inlined_call_operand.hbm [shape: bf16[2,8,32], index: 8, kind: output, shape index: {2}]
  %9 = xla_tuple %s6, %s7, %s8
  %s10 = sld [smem:[#allocation0]]
  $region93: #{tpu_custom_call.1} parent=0
    _
  %s12 = ssub.s32 1, %s10
  %s13 = scalar_select 0, %s12, %s10
  $region1: #{tpu_custom_call.1} parent=0
    #allocation2 [shape = 'u8[8192]{0}', space=vmem, size = 0x2000, scoped, tag = 'input window, operand 0']
    #allocation3 [shape = 's32[2]{0}', space=sflag, size = 0x8, scoped, tag = 'scoped memory for tpu_custom_call.1']
    #allocation4 [shape = 's32[2]{0}', space=sflag, size = 0x8, scoped, tag = 'scoped memory for tpu_custom_call.1']
    #allocation5 [shape = 'u8[4096]{0}', space=vmem, size = 0x1000, scoped, tag = 'input window, operand 1, single buffered']
    #allocation6 [shape = 's32[1]{0}', space=sflag, size = 0x4, scoped, tag = 'scoped memory for tpu_custom_call.1']
    #allocation7 [shape = 'u8[4096]{0}', space=vmem, size = 0x1000, scoped, tag = 'input window, operand 2, single buffered']
    #allocation8 [shape = 'u8[8192]{0}', space=vmem, size = 0x2000, scoped, tag = 'input window, operand 3, single buffered']
    #allocation9 [shape = 's32[1]{0}', space=sflag, size = 0x4, scoped, tag = 'scoped memory for tpu_custom_call.1']
    #allocation10 [shape = 'u8[8192]{0}', space=vmem, size = 0x2000, scoped, tag = 'input window, operand 4, single buffered']
    #allocation11 [shape = 'u8[4096]{0}', space=vmem, size = 0x1000, scoped, tag = 'output window, operand 0']
    #allocation12 [shape = 'u8[4096]{0}', space=vmem, size = 0x1000, scoped, tag = 'output window, operand 1']
    #allocation13 [shape = 's32[2]{0}', space=sflag, size = 0x8, scoped, tag = 'scoped memory for tpu_custom_call.1']
    #allocation14 [shape = 'u8[4096]{0}', space=vmem, size = 0x1000, scoped, tag = 'output window, operand 2']
    %14 = vsyncpa [#allocation3], 0
    %s15 = scalar_lea.sflag [#allocation3], 1
    %16 = vsyncpa %s15, 0
    %17 = vsyncpa [#allocation6], 0
    %18 = vsyncpa [#allocation9], 0
    %19 = vsyncpa [#allocation4], 0
    %s20 = scalar_lea.sflag [#allocation4], 1
    %21 = vsyncpa %s20, 0
    %22 = vsyncpa [#allocation13], 0
    %s23 = scalar_lea.sflag [#allocation13], 1
    %24 = vsyncpa %s23, 0
    loop: start=0, step=1, limit=4
    $region2: #{tpu_custom_call.1} parent=1 // loop_pre_header
      _
    $region3: #{tpu_custom_call.1} parent=1 // loop_header
      %s26 = sphi 0, %s30
      %p27 = scmp.ge.s32.totalorder %s26, 4
      %s33 = sphi 0, %s45
      %s34 = sphi 0, %s41
      %s35 = sphi 0, %s33
      %s36 = sphi 0, %s34
      %s37 = sphi 0, %s35
      %s38 = sphi 0, %s36
      %s50 = sphi 0, %s52
      %s53 = sphi 0, %s50
      %s54 = sphi 0, %s53
      %s70 = sphi 0, %s54
      %s76 = sphi 0, %s78
      %s79 = sphi 0, %s76
      %s80 = sphi 0, %s79
      %s96 = sphi 0, %s80
      %s102 = sphi 0, %s104
      %s105 = sphi 0, %s102
      %s106 = sphi 0, %s105
      %s122 = sphi 0, %s106
      %s126 = sphi 0, %s126
      %s128 = sphi 0, %s126
      %s129 = sphi 0, %s128
      %s143 = sphi 0, %s129
      %s147 = sphi 0, %s147
      %s149 = sphi 0, %s147
      %s150 = sphi 0, %s149
      %s164 = sphi 0, %s150
      %s168 = sphi 0, %s168
      %s170 = sphi 0, %s168
      %s171 = sphi 0, %s170
      %s185 = sphi 0, %s171
      %s193 = sphi 0, %s195
      %s196 = sphi 0, %s193
      %s197 = sphi 0, %s196
      %s213 = sphi 0, %s197
      %s221 = sphi 0, %s223
      %s224 = sphi 0, %s221
      %s225 = sphi 0, %s224
      %s241 = sphi 0, %s225
      %s249 = sphi 0, %s251
      %s252 = sphi 0, %s249
      %s253 = sphi 0, %s252
      %s269 = sphi 0, %s253
    $region4: #{tpu_custom_call.1} parent=1 // loop_header_branch
      %29 = sbr.rel (%p27) target = $region8
    $region5: #{tpu_custom_call.1} parent=1 // loop_body
      %s31 = ssub.s32 %s26, 1
      %s32 = ssub.s32 %s26, 2
      %s39 = sadd.s32 1, %s34
      %p40 = scmp.ge.s32.totalorder %s39, 1
      %s41 = scalar_select %p40, 0, %s39
      %s42 = sadd.s32 1, %s33
      %s43 = scalar_select %p40, %s42, %s33
      %p44 = scmp.ge.s32.totalorder %s43, 2
      %s45 = scalar_select %p44, 0, %s43
      %s46 = ssub.s32 %s33, %s45
      %s47 = ssub.s32 %s34, %s41
      %s48 = sor.u32 %s46, %s47
      %p49 = scmp.eq.s32.totalorder %s48, 0
      %s51 = sadd.s32 %s50, 1
      %s52 = scalar_select %p49, %s50, %s51
      %p55 = pneg %p49
      %p56 = scmp.eq.s32.totalorder %s26, 1
      %p57 = por %p55, %p56
      %p58 = scmp.ne.s32.totalorder %s50, %s53
      %p59 = scmp.eq.s32.totalorder %s26, 0
      %p60 = por %p58, %p59
      %p61 = scmp.ne.s32.totalorder %s50, %s53
      %p62 = scmp.eq.s32.totalorder %s31, 1
      %p63 = por %p61, %p62
      %p64 = scmp.ne.s32.totalorder %s53, %s54
      %p65 = scmp.eq.s32.totalorder %s31, 0
      %p66 = por %p64, %p65
      %p67 = scmp.ne.s32.totalorder %s53, %s54
      %p68 = scmp.eq.s32.totalorder %s32, 1
      %p69 = por %p67, %p68
      %p71 = scmp.ne.s32.totalorder %s54, %s70
      %p72 = scmp.eq.s32.totalorder %s32, 0
      %p73 = por %p71, %p72
      %s74 = ssub.s32 %s34, %s41
      %p75 = scmp.eq.s32.totalorder %s74, 0
      %s77 = sadd.s32 %s76, 1
      %s78 = scalar_select %p75, %s76, %s77
      %p81 = pneg %p75
      %p82 = scmp.eq.s32.totalorder %s26, 1
      %p83 = por %p81, %p82
      %p84 = scmp.ne.s32.totalorder %s76, %s79
      %p85 = scmp.eq.s32.totalorder %s26, 0
      %p86 = por %p84, %p85
      %p87 = scmp.ne.s32.totalorder %s76, %s79
      %p88 = scmp.eq.s32.totalorder %s31, 1
      %p89 = por %p87, %p88
      %p90 = scmp.ne.s32.totalorder %s79, %s80
      %p91 = scmp.eq.s32.totalorder %s31, 0
      %p92 = por %p90, %p91
      %p93 = scmp.ne.s32.totalorder %s79, %s80
      %p94 = scmp.eq.s32.totalorder %s32, 1
      %p95 = por %p93, %p94
      %p97 = scmp.ne.s32.totalorder %s80, %s96
      %p98 = scmp.eq.s32.totalorder %s32, 0
      %p99 = por %p97, %p98
      %s100 = ssub.s32 %s34, %s41
      %p101 = scmp.eq.s32.totalorder %s100, 0
      %s103 = sadd.s32 %s102, 1
      %s104 = scalar_select %p101, %s102, %s103
      %p107 = pneg %p101
      %p108 = scmp.eq.s32.totalorder %s26, 1
      %p109 = por %p107, %p108
      %p110 = scmp.ne.s32.totalorder %s102, %s105
      %p111 = scmp.eq.s32.totalorder %s26, 0
      %p112 = por %p110, %p111
      %p113 = scmp.ne.s32.totalorder %s102, %s105
      %p114 = scmp.eq.s32.totalorder %s31, 1
      %p115 = por %p113, %p114
      %p116 = scmp.ne.s32.totalorder %s105, %s106
      %p117 = scmp.eq.s32.totalorder %s31, 0
      %p118 = por %p116, %p117
      %p119 = scmp.ne.s32.totalorder %s105, %s106
      %p120 = scmp.eq.s32.totalorder %s32, 1
      %p121 = por %p119, %p120
      %p123 = scmp.ne.s32.totalorder %s106, %s122
      %p124 = scmp.eq.s32.totalorder %s32, 0
      %p125 = por %p123, %p124
      %s127 = sadd.s32 %s126, 1
      %p130 = scmp.eq.s32.totalorder %s26, 1
      %p131 = scmp.ne.s32.totalorder %s126, %s128
      %p132 = scmp.eq.s32.totalorder %s26, 0
      %p133 = por %p131, %p132
      %p134 = scmp.ne.s32.totalorder %s126, %s128
      %p135 = scmp.eq.s32.totalorder %s31, 1
      %p136 = por %p134, %p135
      %p137 = scmp.ne.s32.totalorder %s128, %s129
      %p138 = scmp.eq.s32.totalorder %s31, 0
      %p139 = por %p137, %p138
      %p140 = scmp.ne.s32.totalorder %s128, %s129
      %p141 = scmp.eq.s32.totalorder %s32, 1
      %p142 = por %p140, %p141
      %p144 = scmp.ne.s32.totalorder %s129, %s143
      %p145 = scmp.eq.s32.totalorder %s32, 0
      %p146 = por %p144, %p145
      %s148 = sadd.s32 %s147, 1
      %p151 = scmp.eq.s32.totalorder %s26, 1
      %p152 = scmp.ne.s32.totalorder %s147, %s149
      %p153 = scmp.eq.s32.totalorder %s26, 0
      %p154 = por %p152, %p153
      %p155 = scmp.ne.s32.totalorder %s147, %s149
      %p156 = scmp.eq.s32.totalorder %s31, 1
      %p157 = por %p155, %p156
      %p158 = scmp.ne.s32.totalorder %s149, %s150
      %p159 = scmp.eq.s32.totalorder %s31, 0
      %p160 = por %p158, %p159
      %p161 = scmp.ne.s32.totalorder %s149, %s150
      %p162 = scmp.eq.s32.totalorder %s32, 1
      %p163 = por %p161, %p162
      %p165 = scmp.ne.s32.totalorder %s150, %s164
      %p166 = scmp.eq.s32.totalorder %s32, 0
      %p167 = por %p165, %p166
      %s169 = sadd.s32 %s168, 1
      %p172 = scmp.eq.s32.totalorder %s26, 1
      %p173 = scmp.ne.s32.totalorder %s168, %s170
      %p174 = scmp.eq.s32.totalorder %s26, 0
      %p175 = por %p173, %p174
      %p176 = scmp.ne.s32.totalorder %s168, %s170
      %p177 = scmp.eq.s32.totalorder %s31, 1
      %p178 = por %p176, %p177
      %p179 = scmp.ne.s32.totalorder %s170, %s171
      %p180 = scmp.eq.s32.totalorder %s31, 0
      %p181 = por %p179, %p180
      %p182 = scmp.ne.s32.totalorder %s170, %s171
      %p183 = scmp.eq.s32.totalorder %s32, 1
      %p184 = por %p182, %p183
      %p186 = scmp.ne.s32.totalorder %s171, %s185
      %p187 = scmp.eq.s32.totalorder %s32, 0
      %p188 = por %p186, %p187
      %s189 = ssub.s32 %s33, %s45
      %s190 = ssub.s32 %s34, %s41
      %s191 = sor.u32 %s189, %s190
      %p192 = scmp.eq.s32.totalorder %s191, 0
      %s194 = sadd.s32 %s193, 1
      %s195 = scalar_select %p192, %s193, %s194
      %p198 = pneg %p192
      %p199 = scmp.eq.s32.totalorder %s26, 1
      %p200 = por %p198, %p199
      %p201 = scmp.ne.s32.totalorder %s193, %s196
      %p202 = scmp.eq.s32.totalorder %s26, 0
      %p203 = por %p201, %p202
      %p204 = scmp.ne.s32.totalorder %s193, %s196
      %p205 = scmp.eq.s32.totalorder %s31, 1
      %p206 = por %p204, %p205
      %p207 = scmp.ne.s32.totalorder %s196, %s197
      %p208 = scmp.eq.s32.totalorder %s31, 0
      %p209 = por %p207, %p208
      %p210 = scmp.ne.s32.totalorder %s196, %s197
      %p211 = scmp.eq.s32.totalorder %s32, 1
      %p212 = por %p210, %p211
      %p214 = scmp.ne.s32.totalorder %s197, %s213
      %p215 = scmp.eq.s32.totalorder %s32, 0
      %p216 = por %p214, %p215
      %s217 = ssub.s32 %s33, %s45
      %s218 = ssub.s32 %s34, %s41
      %s219 = sor.u32 %s217, %s218
      %p220 = scmp.eq.s32.totalorder %s219, 0
      %s222 = sadd.s32 %s221, 1
      %s223 = scalar_select %p220, %s221, %s222
      %p226 = pneg %p220
      %p227 = scmp.eq.s32.totalorder %s26, 1
      %p228 = por %p226, %p227
      %p229 = scmp.ne.s32.totalorder %s221, %s224
      %p230 = scmp.eq.s32.totalorder %s26, 0
      %p231 = por %p229, %p230
      %p232 = scmp.ne.s32.totalorder %s221, %s224
      %p233 = scmp.eq.s32.totalorder %s31, 1
      %p234 = por %p232, %p233
      %p235 = scmp.ne.s32.totalorder %s224, %s225
      %p236 = scmp.eq.s32.totalorder %s31, 0
      %p237 = por %p235, %p236
      %p238 = scmp.ne.s32.totalorder %s224, %s225
      %p239 = scmp.eq.s32.totalorder %s32, 1
      %p240 = por %p238, %p239
      %p242 = scmp.ne.s32.totalorder %s225, %s241
      %p243 = scmp.eq.s32.totalorder %s32, 0
      %p244 = por %p242, %p243
      %s245 = ssub.s32 %s33, %s45
      %s246 = ssub.s32 %s34, %s41
      %s247 = sor.u32 %s245, %s246
      %p248 = scmp.eq.s32.totalorder %s247, 0
      %s250 = sadd.s32 %s249, 1
      %s251 = scalar_select %p248, %s249, %s250
      %p254 = pneg %p248
      %p255 = scmp.eq.s32.totalorder %s26, 1
      %p256 = por %p254, %p255
      %p257 = scmp.ne.s32.totalorder %s249, %s252
      %p258 = scmp.eq.s32.totalorder %s26, 0
      %p259 = por %p257, %p258
      %p260 = scmp.ne.s32.totalorder %s249, %s252
      %p261 = scmp.eq.s32.totalorder %s31, 1
      %p262 = por %p260, %p261
      %p263 = scmp.ne.s32.totalorder %s252, %s253
      %p264 = scmp.eq.s32.totalorder %s31, 0
      %p265 = por %p263, %p264
      %p266 = scmp.ne.s32.totalorder %s252, %s253
      %p267 = scmp.eq.s32.totalorder %s32, 1
      %p268 = por %p266, %p267
      %p270 = scmp.ne.s32.totalorder %s253, %s269
      %p271 = scmp.eq.s32.totalorder %s32, 0
      %p272 = por %p270, %p271
      %p273 = scmp.le.s32.totalorder 1, %s26
      %p274 = scmp.lt.s32.totalorder %s26, 3
      %p275 = pnand %p273, %p274
      %p276 = pneg %p275
      // Predicated region
      $region9: #{tpu_custom_call.1} parent=5 // pred_check
        _
      $region10: #{tpu_custom_call.1} parent=5 // pred_check_branch
        %278 = sbr.rel (%p275) target = $region12
      $region11: #{tpu_custom_call.1} parent=5 // pred_region
        %s279 = ssub.s32 %s26, 1
        // Predicated region
        $region13: #{tpu_custom_call.1} parent=11 // pred_check
          %p280 = pneg %p92
        $region14: #{tpu_custom_call.1} parent=11 // pred_check_branch
          %282 = sbr.rel (%p280) target = $region16
        $region15: #{tpu_custom_call.1} parent=11 // pred_region
          %s284 = ssub.s32 128, 128
          %285 = vsyncadd [#allocation6], %s284
          %s286 = smul.addr %s36, 128
          %s287 = scalar_lea.hbm %s1, %s286
          %s289 = sshll.u32 [#allocation5], 4
          %s290 = int_to_ptr.vmem [resolvable:$true] %s289
          %292 = dma.hbm_to_vmem [thread:$0]  %s287, 128, %s290, [#allocation6]
        $region16: #{tpu_custom_call.1} parent=11 // pred_fallthru
          _
        // Predicated region
        $region17: #{tpu_custom_call.1} parent=11 // pred_check
          %p293 = pneg %p118
        $region18: #{tpu_custom_call.1} parent=11 // pred_check_branch
          %295 = sbr.rel (%p293) target = $region20
        $region19: #{tpu_custom_call.1} parent=11 // pred_region
          %s297 = ssub.s32 128, 128
          %298 = vsyncadd [#allocation6], %s297
          %s299 = smul.addr %s36, 128
          %s300 = scalar_lea.hbm %s2, %s299
          %s302 = sshll.u32 [#allocation7], 4
          %s303 = int_to_ptr.vmem [resolvable:$true] %s302
          %305 = dma.hbm_to_vmem [thread:$0]  %s300, 128, %s303, [#allocation6]
        $region20: #{tpu_custom_call.1} parent=11 // pred_fallthru
          _
        // Predicated region
        $region21: #{tpu_custom_call.1} parent=11 // pred_check
          %p306 = pneg %p139
        $region22: #{tpu_custom_call.1} parent=11 // pred_check_branch
          %308 = sbr.rel (%p306) target = $region24
        $region23: #{tpu_custom_call.1} parent=11 // pred_region
          %s310 = ssub.s32 256, 256
          %311 = vsyncadd [#allocation9], %s310
          %s312 = sshll.u32 [#allocation8], 4
          %s313 = int_to_ptr.vmem [resolvable:$true] %s312
          %318 = dma.hbm_to_vmem [thread:$0]  %s3, 256, %s313, [#allocation9], 64, 64, 4
        $region24: #{tpu_custom_call.1} parent=11 // pred_fallthru
          _
        // Predicated region
        $region25: #{tpu_custom_call.1} parent=11 // pred_check
          %p319 = pneg %p160
        $region26: #{tpu_custom_call.1} parent=11 // pred_check_branch
          %321 = sbr.rel (%p319) target = $region28
        $region27: #{tpu_custom_call.1} parent=11 // pred_region
          %s323 = ssub.s32 256, 256
          %324 = vsyncadd [#allocation9], %s323
          %s325 = sshll.u32 [#allocation10], 4
          %s326 = int_to_ptr.vmem [resolvable:$true] %s325
          %331 = dma.hbm_to_vmem [thread:$0]  %s4, 256, %s326, [#allocation9], 64, 64, 4
        $region28: #{tpu_custom_call.1} parent=11 // pred_fallthru
          _
        // Predicated region
        $region29: #{tpu_custom_call.1} parent=11 // pred_check
          %p332 = pneg %p181
        $region30: #{tpu_custom_call.1} parent=11 // pred_check_branch
          %334 = sbr.rel (%p332) target = $region32
        $region31: #{tpu_custom_call.1} parent=11 // pred_region
          _
        $region32: #{tpu_custom_call.1} parent=11 // pred_fallthru
          _
      $region12: #{tpu_custom_call.1} parent=5 // pred_fallthru
        _
      %p335 = scmp.lt.s32.totalorder %s26, 2
      // Predicated region
      $region33: #{tpu_custom_call.1} parent=5 // pred_check
        %p336 = pneg %p335
      $region34: #{tpu_custom_call.1} parent=5 // pred_check_branch
        %338 = sbr.rel (%p336) target = $region36
      $region35: #{tpu_custom_call.1} parent=5 // pred_region
        // Predicated region
        $region37: #{tpu_custom_call.1} parent=35 // pred_check
          %p339 = pneg %p60
        $region38: #{tpu_custom_call.1} parent=35 // pred_check_branch
          %341 = sbr.rel (%p339) target = $region40
        $region39: #{tpu_custom_call.1} parent=35 // pred_region
          %s342 = sand.u32 %s50, 1
          %s343 = scalar_lea.sflag [#allocation3], %s342
          %s344 = sand.u32 %s50, 1
          %s345 = smul.addr %s344, 8
          %s346 = scalar_lea.vmem [#allocation2], %s345
          %s348 = ssub.s32 128, 128
          %349 = vsyncadd %s343, %s348
          %s350 = sadd.s32 %s34, %s33
          %s351 = smul.addr %s350, 128
          %s352 = scalar_lea.hbm %s0, %s351
          %s354 = sshll.u32 %s346, 4
          %s355 = int_to_ptr.vmem [resolvable:$true] %s354
          %357 = dma.hbm_to_vmem [thread:$0]  %s352, 128, %s355, %s343
        $region40: #{tpu_custom_call.1} parent=35 // pred_fallthru
          _
      $region36: #{tpu_custom_call.1} parent=5 // pred_fallthru
        _
      %p358 = scmp.le.s32.totalorder 1, %s26
      %p359 = scmp.lt.s32.totalorder %s26, 3
      %p360 = pnand %p358, %p359
      %p361 = pneg %p360
      // Predicated region
      $region41: #{tpu_custom_call.1} parent=5 // pred_check
        _
      $region42: #{tpu_custom_call.1} parent=5 // pred_check_branch
        %363 = sbr.rel (%p360) target = $region44
      $region43: #{tpu_custom_call.1} parent=5 // pred_region
        %s364 = ssub.s32 %s26, 1
        %s365 = sand.u32 %s53, 1
        %s366 = scalar_lea.sflag [#allocation3], %s365
        %s367 = sand.u32 %s53, 1
        %s368 = smul.addr %s367, 8
        %s369 = scalar_lea.vmem [#allocation2], %s368
        // Predicated region
        $region45: #{tpu_custom_call.1} parent=43 // pred_check
          %p370 = pneg %p66
        $region46: #{tpu_custom_call.1} parent=43 // pred_check_branch
          %372 = sbr.rel (%p370) target = $region48
        $region47: #{tpu_custom_call.1} parent=43 // pred_region
          %373 = dma.done %s366, 128
        $region48: #{tpu_custom_call.1} parent=43 // pred_fallthru
          _
        // Predicated region
        $region49: #{tpu_custom_call.1} parent=43 // pred_check
          %p374 = pneg %p92
        $region50: #{tpu_custom_call.1} parent=43 // pred_check_branch
          %376 = sbr.rel (%p374) target = $region52
        $region51: #{tpu_custom_call.1} parent=43 // pred_region
          %377 = dma.done [#allocation6], 128
        $region52: #{tpu_custom_call.1} parent=43 // pred_fallthru
          _
        // Predicated region
        $region53: #{tpu_custom_call.1} parent=43 // pred_check
          %p378 = pneg %p118
        $region54: #{tpu_custom_call.1} parent=43 // pred_check_branch
          %380 = sbr.rel (%p378) target = $region56
        $region55: #{tpu_custom_call.1} parent=43 // pred_region
          %381 = dma.done [#allocation6], 128
        $region56: #{tpu_custom_call.1} parent=43 // pred_fallthru
          _
        // Predicated region
        $region57: #{tpu_custom_call.1} parent=43 // pred_check
          %p382 = pneg %p139
        $region58: #{tpu_custom_call.1} parent=43 // pred_check_branch
          %384 = sbr.rel (%p382) target = $region60
        $region59: #{tpu_custom_call.1} parent=43 // pred_region
          %385 = dma.done [#allocation9], 256
        $region60: #{tpu_custom_call.1} parent=43 // pred_fallthru
          _
        // Predicated region
        $region61: #{tpu_custom_call.1} parent=43 // pred_check
          %p386 = pneg %p160
        $region62: #{tpu_custom_call.1} parent=43 // pred_check_branch
          %388 = sbr.rel (%p386) target = $region64
        $region63: #{tpu_custom_call.1} parent=43 // pred_region
          %389 = dma.done [#allocation9], 256
        $region64: #{tpu_custom_call.1} parent=43 // pred_fallthru
          _
        %s390 = sand.u32 %s53, 1
        %s391 = scalar_lea.sflag [#allocation3], %s390
        %s392 = sand.u32 %s53, 1
        %s393 = smul.addr %s392, 8
        %s394 = scalar_lea.vmem [#allocation2], %s393
        %p395 = pneg %p66
        %p396 = pneg %p63
        %p397 = pneg %p92
        %p398 = pneg %p89
        %p399 = pneg %p118
        %p400 = pneg %p115
        %p401 = pneg %p139
        %p402 = pneg %p136
        %p403 = pneg %p160
        %p404 = pneg %p157
        %p405 = pneg %p181
        %p406 = pneg %p178
        %p407 = pneg %p209
        %p408 = pneg %p206
        %s409 = sand.u32 %s196, 1
        %s410 = scalar_lea.sflag [#allocation4], %s409
        %s411 = sand.u32 %s196, 1
        %s412 = smul.addr %s411, 4
        %s413 = scalar_lea.vmem [#allocation11], %s412
        %p414 = pneg %p237
        %p415 = pneg %p234
        %s416 = sand.u32 %s31, 1
        %s417 = scalar_lea.sflag [#allocation13], %s416
        %s418 = sand.u32 %s224, 1
        %s419 = smul.addr %s418, 4
        %s420 = scalar_lea.vmem [#allocation12], %s419
        %p421 = pneg %p265
        %p422 = pneg %p262
        %s423 = sand.u32 %s31, 1
        %s424 = scalar_lea.sflag [#allocation13], %s423
        %s425 = sand.u32 %s252, 1
        %s426 = smul.addr %s425, 4
        %s427 = scalar_lea.vmem [#allocation14], %s426
        %v429 = vld [vmem:[%s369] sm:$0xff]
        %v430 = vpack.c.bf16 %v429, %v429
        %v431 = vld [vmem:[#allocation5] sm:$0xff]
        %v432 = vld [vmem:[#allocation7] sm:$0xff]
        %v433 = vld [vmem:[#allocation8] sm:$0xf]
        %v434 = vld [vmem:[#allocation8 + $0x4] sm:$0xf]
        %v435 = vld [vmem:[#allocation8 + $0x8] sm:$0xf]
        %v436 = vld [vmem:[#allocation8 + $0xc] sm:$0xf]
        %v441 = vunpack.c.l.b16 %v433
        %v442 = vunpack.c.l.b16 %v434
        %v443 = vunpack.c.l.b16 %v435
        %v444 = vunpack.c.l.b16 %v436
        %v445 = vpack.c.b16 %v442, %v441
        %v446 = vpack.c.b16 %v444, %v443
        %vm449 = vcmask 261120
        %v451 = vsel %vm449, %v430, 0
        %453 = vmatprep.subr.bf16.mxu0 0
        %454 = vmatpush1.bf16.msra.mxu0 %v445
        %455 = vmatprep.subr.bf16.mxu0 0
        %456 = vmatpush1.bf16.msra.mxu0 %v446
        %457 = vmatprep.subr.bf16.mxu0 0
        %458 = vmatpush1.bf16.msra.mxu0 0
        %459 = vmatprep.subr.bf16.mxu0 0
        %460 = vmatpush1.bf16.msra.mxu0 0
        %461 = vmatprep.subr.bf16.mxu0 0
        %462 = vmatpush1.bf16.msra.mxu0 0
        %463 = vmatprep.subr.bf16.mxu0 0
        %464 = vmatpush1.bf16.msra.mxu0 0
        %465 = vmatprep.subr.bf16.mxu0 0
        %466 = vmatpush1.bf16.msra.mxu0 0
        %467 = vmatprep.subr.bf16.mxu0 0
        %468 = vmatpush1.bf16.msra.mxu0 0
        %469 = vmatprep.subr.bf16.mxu0 0
        %470 = vmatpush1.bf16.msra.mxu0 0
        %471 = vmatprep.subr.bf16.mxu0 0
        %472 = vmatpush1.bf16.msra.mxu0 0
        %473 = vmatprep.subr.bf16.mxu0 0
        %474 = vmatpush1.bf16.msra.mxu0 0
        %475 = vmatprep.subr.bf16.mxu0 0
        %476 = vmatpush1.bf16.msra.mxu0 0
        %477 = vmatprep.subr.bf16.mxu0 0
        %478 = vmatpush1.bf16.msra.mxu0 0
        %479 = vmatprep.subr.bf16.mxu0 0
        %480 = vmatpush1.bf16.msra.mxu0 0
        %481 = vmatprep.subr.bf16.mxu0 0
        %482 = vmatpush1.bf16.msra.mxu0 0
        %483 = vmatprep.subr.bf16.mxu0 0
        %484 = vmatpush1.bf16.msra.mxu0 0
        %485 = vmatprep.mubr.bf16.mxu0 0
        %486 = vmatmul.mubr.bf16.gmra.mrb[0].mxu0 %v451
        %v487 = vpop.f32.mrb[0].mxu0
        %v488 = vadd.f32 0.0, %v487
        %v489 = vpop.f32.mrb[0].mxu0
        %v490 = vpop.f32.mrb[0].mxu0
        %v491 = vpop.f32.mrb[0].mxu0
        %492 = vdwg.mxu0
        %v493 = vld [vmem:[#allocation10] sm:$0xf]
        %v494 = vld [vmem:[#allocation10 + $0x4] sm:$0xf]
        %v495 = vld [vmem:[#allocation10 + $0x8] sm:$0xf]
        %v496 = vld [vmem:[#allocation10 + $0xc] sm:$0xf]
        %v501 = vunpack.c.l.b16 %v493
        %v502 = vunpack.c.l.b16 %v494
        %v503 = vunpack.c.l.b16 %v495
        %v504 = vunpack.c.l.b16 %v496
        %v505 = vpack.c.b16 %v502, %v501
        %v506 = vpack.c.b16 %v504, %v503
        %509 = vmatprep.subr.bf16.mxu0 0
        %510 = vmatpush1.bf16.msra.mxu0 %v505
        %511 = vmatprep.subr.bf16.mxu0 0
        %512 = vmatpush1.bf16.msra.mxu0 %v506
        %513 = vmatprep.subr.bf16.mxu0 0
        %514 = vmatpush1.bf16.msra.mxu0 0
        %515 = vmatprep.subr.bf16.mxu0 0
        %516 = vmatpush1.bf16.msra.mxu0 0
        %517 = vmatprep.subr.bf16.mxu0 0
        %518 = vmatpush1.bf16.msra.mxu0 0
        %519 = vmatprep.subr.bf16.mxu0 0
        %520 = vmatpush1.bf16.msra.mxu0 0
        %521 = vmatprep.subr.bf16.mxu0 0
        %522 = vmatpush1.bf16.msra.mxu0 0
        %523 = vmatprep.subr.bf16.mxu0 0
        %524 = vmatpush1.bf16.msra.mxu0 0
        %525 = vmatprep.subr.bf16.mxu0 0
        %526 = vmatpush1.bf16.msra.mxu0 0
        %527 = vmatprep.subr.bf16.mxu0 0
        %528 = vmatpush1.bf16.msra.mxu0 0
        %529 = vmatprep.subr.bf16.mxu0 0
        %530 = vmatpush1.bf16.msra.mxu0 0
        %531 = vmatprep.subr.bf16.mxu0 0
        %532 = vmatpush1.bf16.msra.mxu0 0
        %533 = vmatprep.subr.bf16.mxu0 0
        %534 = vmatpush1.bf16.msra.mxu0 0
        %535 = vmatprep.subr.bf16.mxu0 0
        %536 = vmatpush1.bf16.msra.mxu0 0
        %537 = vmatprep.subr.bf16.mxu0 0
        %538 = vmatpush1.bf16.msra.mxu0 0
        %539 = vmatprep.subr.bf16.mxu0 0
        %540 = vmatpush1.bf16.msra.mxu0 0
        %541 = vmatprep.mubr.bf16.mxu0 0
        %542 = vmatmul.mubr.bf16.gmra.mrb[0].mxu0 %v451
        %v543 = vpop.f32.mrb[0].mxu0
        %v544 = vadd.f32 0.0, %v543
        %v545 = vpop.f32.mrb[0].mxu0
        %v546 = vpop.f32.mrb[0].mxu0
        %v547 = vpop.f32.mrb[0].mxu0
        %548 = vdwg.mxu0
        %v549 = vld [vmem:[%s5] sm:$0xf]
        %v550 = vld [vmem:[%s5 + $0x4] sm:$0xf]
        %v551 = vld [vmem:[%s5 + $0x8] sm:$0xf]
        %v552 = vld [vmem:[%s5 + $0xc] sm:$0xf]
        %v557 = vunpack.c.l.b16 %v549
        %v558 = vunpack.c.l.b16 %v550
        %v559 = vunpack.c.l.b16 %v551
        %v560 = vunpack.c.l.b16 %v552
        %v561 = vpack.c.b16 %v558, %v557
        %v562 = vpack.c.b16 %v560, %v559
        %565 = vmatprep.subr.bf16.mxu0 0
        %566 = vmatpush1.bf16.msra.mxu0 %v561
        %567 = vmatprep.subr.bf16.mxu0 0
        %568 = vmatpush1.bf16.msra.mxu0 %v562
        %569 = vmatprep.subr.bf16.mxu0 0
        %570 = vmatpush1.bf16.msra.mxu0 0
        %571 = vmatprep.subr.bf16.mxu0 0
        %572 = vmatpush1.bf16.msra.mxu0 0
        %573 = vmatprep.subr.bf16.mxu0 0
        %574 = vmatpush1.bf16.msra.mxu0 0
        %575 = vmatprep.subr.bf16.mxu0 0
        %576 = vmatpush1.bf16.msra.mxu0 0
        %577 = vmatprep.subr.bf16.mxu0 0
        %578 = vmatpush1.bf16.msra.mxu0 0
        %579 = vmatprep.subr.bf16.mxu0 0
        %580 = vmatpush1.bf16.msra.mxu0 0
        %581 = vmatprep.subr.bf16.mxu0 0
        %582 = vmatpush1.bf16.msra.mxu0 0
        %583 = vmatprep.subr.bf16.mxu0 0
        %584 = vmatpush1.bf16.msra.mxu0 0
        %585 = vmatprep.subr.bf16.mxu0 0
        %586 = vmatpush1.bf16.msra.mxu0 0
        %587 = vmatprep.subr.bf16.mxu0 0
        %588 = vmatpush1.bf16.msra.mxu0 0
        %589 = vmatprep.subr.bf16.mxu0 0
        %590 = vmatpush1.bf16.msra.mxu0 0
        %591 = vmatprep.subr.bf16.mxu0 0
        %592 = vmatpush1.bf16.msra.mxu0 0
        %593 = vmatprep.subr.bf16.mxu0 0
        %594 = vmatpush1.bf16.msra.mxu0 0
        %595 = vmatprep.subr.bf16.mxu0 0
        %596 = vmatpush1.bf16.msra.mxu0 0
        %597 = vmatprep.mubr.bf16.mxu0 0
        %598 = vmatmul.mubr.bf16.gmra.mrb[0].mxu0 %v451
        %v599 = vpop.f32.mrb[0].mxu0
        %v600 = vadd.f32 0.0, %v599
        %v601 = vpop.f32.mrb[0].mxu0
        %v602 = vpop.f32.mrb[0].mxu0
        %v603 = vpop.f32.mrb[0].mxu0
        %604 = vdwg.mxu0
        %v605 = vmul.f32 %v488, %v431
        %607 = vrot.lane.b32.xlu0 %v432, 16
        %v608 = vpop.permute.xlu0 %607
        %v610 = vmul.f32 %v488, %v608
        %612 = vrot.lane.b32.xlu0 %v610, 112
        %v613 = vpop.permute.xlu0 %612
        %v615 = vsub.f32 %v605, %v613
        %617 = vrot.lane.b32.xlu0 %v431, 16
        %v618 = vpop.permute.xlu0 %617
        %v620 = vmul.f32 %v488, %v618
        %v621 = vmul.f32 %v488, %v432
        %623 = vrot.lane.b32.xlu0 %v621, 16
        %v624 = vpop.permute.xlu0 %623
        %v626 = vadd.f32 %v620, %v624
        %vm627 = vcmask 130048
        %v628 = vsel %vm627, %v615, %v626
        %v629 = vpack.c.bf16 %v628, %v628
        %vm630 = vcmask 257024
        %631 = vst.msk [vmem:[%s413] sm:$0xf] %vm630, %v629
        %v632 = vmul.f32 %v544, %v431
        %v633 = vmul.f32 %v544, %v608
        %635 = vrot.lane.b32.xlu0 %v633, 112
        %v636 = vpop.permute.xlu0 %635
        %v638 = vsub.f32 %v632, %v636
        %v639 = vmul.f32 %v544, %v618
        %v640 = vmul.f32 %v544, %v432
        %642 = vrot.lane.b32.xlu0 %v640, 16
        %v643 = vpop.permute.xlu0 %642
        %v645 = vadd.f32 %v639, %v643
        %v646 = vsel %vm627, %v638, %v645
        %v647 = vpack.c.bf16 %v646, %v646
        %648 = vst.msk [vmem:[%s420] sm:$0xf] %vm630, %v647
        %v649 = vpack.c.bf16 %v600, %v600
        %650 = vst.msk [vmem:[%s427] sm:$0xf] %vm630, %v649
        %s651 = sand.u32 %s196, 1
        %s652 = scalar_lea.sflag [#allocation4], %s651
        %s653 = sand.u32 %s196, 1
        %s654 = smul.addr %s653, 4
        %s655 = scalar_lea.vmem [#allocation11], %s654
        %s656 = sand.u32 %s31, 1
        %s657 = scalar_lea.sflag [#allocation13], %s656
        %s658 = sand.u32 %s224, 1
        %s659 = smul.addr %s658, 4
        %s660 = scalar_lea.vmem [#allocation12], %s659
        %s661 = sand.u32 %s31, 1
        %s662 = scalar_lea.sflag [#allocation13], %s661
        %s663 = sand.u32 %s252, 1
        %s664 = smul.addr %s663, 4
        %s665 = scalar_lea.vmem [#allocation14], %s664
        // Predicated region
        $region65: #{tpu_custom_call.1} parent=43 // pred_check
          %p666 = pneg %p206
        $region66: #{tpu_custom_call.1} parent=43 // pred_check_branch
          %668 = sbr.rel (%p666) target = $region68
        $region67: #{tpu_custom_call.1} parent=43 // pred_region
          %s670 = ssub.s32 64, 64
          %671 = vsyncadd %s652, %s670
          %s672 = sadd.s32 %s36, %s35
          %s673 = smul.addr %s672, 64
          %s674 = scalar_lea.hbm %s6, %s673
          %s676 = sshll.u32 %s655, 4
          %s677 = int_to_ptr.vmem [resolvable:$true] %s676
          %679 = dma.vmem_to_hbm [thread:$0]  %s677, 64, %s674, %s652
        $region68: #{tpu_custom_call.1} parent=43 // pred_fallthru
          _
        // Predicated region
        $region69: #{tpu_custom_call.1} parent=43 // pred_check
          %p680 = pneg %p234
        $region70: #{tpu_custom_call.1} parent=43 // pred_check_branch
          %682 = sbr.rel (%p680) target = $region72
        $region71: #{tpu_custom_call.1} parent=43 // pred_region
          %s684 = ssub.s32 64, 64
          %685 = vsyncadd %s657, %s684
          %s686 = sadd.s32 %s36, %s35
          %s687 = smul.addr %s686, 64
          %s688 = scalar_lea.hbm %s7, %s687
          %s690 = sshll.u32 %s660, 4
          %s691 = int_to_ptr.vmem [resolvable:$true] %s690
          %693 = dma.vmem_to_hbm [thread:$0]  %s691, 64, %s688, %s657
        $region72: #{tpu_custom_call.1} parent=43 // pred_fallthru
          _
        // Predicated region
        $region73: #{tpu_custom_call.1} parent=43 // pred_check
          %p694 = pneg %p262
        $region74: #{tpu_custom_call.1} parent=43 // pred_check_branch
          %696 = sbr.rel (%p694) target = $region76
        $region75: #{tpu_custom_call.1} parent=43 // pred_region
          %s698 = ssub.s32 64, 64
          %699 = vsyncadd %s662, %s698
          %s700 = sadd.s32 %s36, %s35
          %s701 = smul.addr %s700, 64
          %s702 = scalar_lea.hbm %s8, %s701
          %s704 = sshll.u32 %s665, 4
          %s705 = int_to_ptr.vmem [resolvable:$true] %s704
          %707 = dma.vmem_to_hbm [thread:$0]  %s705, 64, %s702, %s662
        $region76: #{tpu_custom_call.1} parent=43 // pred_fallthru
          _
      $region44: #{tpu_custom_call.1} parent=5 // pred_fallthru
        _
      %p708 = scmp.le.s32.totalorder 2, %s26
      // Predicated region
      $region77: #{tpu_custom_call.1} parent=5 // pred_check
        %p709 = pneg %p708
      $region78: #{tpu_custom_call.1} parent=5 // pred_check_branch
        %711 = sbr.rel (%p709) target = $region80
      $region79: #{tpu_custom_call.1} parent=5 // pred_region
        %s712 = ssub.s32 %s26, 2
        // Predicated region
        $region81: #{tpu_custom_call.1} parent=79 // pred_check
          %p713 = pneg %p212
        $region82: #{tpu_custom_call.1} parent=79 // pred_check_branch
          %715 = sbr.rel (%p713) target = $region84
        $region83: #{tpu_custom_call.1} parent=79 // pred_region
          %s716 = sand.u32 %s197, 1
          %s717 = scalar_lea.sflag [#allocation4], %s716
          %s718 = sand.u32 %s197, 1
          %s719 = smul.addr %s718, 4
          %s720 = scalar_lea.vmem [#allocation11], %s719
          %721 = dma.done %s717, 64
        $region84: #{tpu_custom_call.1} parent=79 // pred_fallthru
          _
        // Predicated region
        $region85: #{tpu_custom_call.1} parent=79 // pred_check
          %p722 = pneg %p240
        $region86: #{tpu_custom_call.1} parent=79 // pred_check_branch
          %724 = sbr.rel (%p722) target = $region88
        $region87: #{tpu_custom_call.1} parent=79 // pred_region
          %s725 = sand.u32 %s32, 1
          %s726 = scalar_lea.sflag [#allocation13], %s725
          %s727 = sand.u32 %s225, 1
          %s728 = smul.addr %s727, 4
          %s729 = scalar_lea.vmem [#allocation12], %s728
          %730 = dma.done %s726, 64
        $region88: #{tpu_custom_call.1} parent=79 // pred_fallthru
          _
        // Predicated region
        $region89: #{tpu_custom_call.1} parent=79 // pred_check
          %p731 = pneg %p268
        $region90: #{tpu_custom_call.1} parent=79 // pred_check_branch
          %733 = sbr.rel (%p731) target = $region92
        $region91: #{tpu_custom_call.1} parent=79 // pred_region
          %s734 = sand.u32 %s32, 1
          %s735 = scalar_lea.sflag [#allocation13], %s734
          %s736 = sand.u32 %s253, 1
          %s737 = smul.addr %s736, 4
          %s738 = scalar_lea.vmem [#allocation14], %s737
          %739 = dma.done %s735, 64
        $region92: #{tpu_custom_call.1} parent=79 // pred_fallthru
          _
      $region80: #{tpu_custom_call.1} parent=5 // pred_fallthru
        _
    $region6: #{tpu_custom_call.1} parent=1 // loop_footer
      %s30 = sadd.s32 1, %s26
    $region7: #{tpu_custom_call.1} parent=1 // loop_footer_branch
      %25 = sbr.rel target = $region3
    $region8: #{tpu_custom_call.1} parent=1 // loop_exit
      _
    %740 = vsyncpa [#allocation3], 1
    %s741 = scalar_lea.sflag [#allocation3], 1
    %742 = vsyncpa %s741, 1
    %743 = vsyncpa [#allocation6], 1
    %744 = vsyncpa [#allocation9], 1
    %745 = vsyncpa [#allocation4], 1
    %s746 = scalar_lea.sflag [#allocation4], 1
    %747 = vsyncpa %s746, 1
    %748 = vsyncpa [#allocation13], 1
    %s749 = scalar_lea.sflag [#allocation13], 1
    %750 = vsyncpa %s749, 1

</llo_original>
